<compile_context>
chip_gen: v6e
topology: v6e:2x2x1
jax: 0.10.0
libtpu: 0.0.40
codegen_flags: <defaults>
</compile_context>

<pallas_src>
import math

import jax
import jax.numpy as jnp
from jax.experimental import pallas as pl
from jax.experimental.pallas import tpu as pltpu

_LANE = 128
_SUBLANE = 8
_BLOCK_BYTES = 8 * 1024 * 1024  # ~8 MiB target per block


def _drop_path_kernel(x_ref, scale_ref, o_ref):
    """out[n, :] = x[n, :] * (mask[n] / keep_prob); scale broadcast over lanes."""
    o_ref[...] = (x_ref[...] * scale_ref[...]).astype(o_ref.dtype)


def _pick_block(N, M, itemsize):
    """Choose a (TN, TM) block for the (N, M) view.

    Legality: TN is a multiple of 8 or equals N; TM is a multiple of 128 or
    equals M.  Target: TN*TM*itemsize ~= _BLOCK_BYTES so the ~0.35 us per-step
    grid overhead is amortized against HBM bandwidth on v5e/v6e/v7x.
    """
    target_elems = max(_BLOCK_BYTES // itemsize, _LANE)
    row_bytes = M * itemsize

    if _SUBLANE * row_bytes >= _BLOCK_BYTES:
        # Large per-sample feature maps: tile the feature axis.
        TN = N if N < _SUBLANE else _SUBLANE
        TM = max((target_elems // TN) // _LANE * _LANE, _LANE)
        if TM >= M:
            TM = M  # full-dim block is always legal
        return TN, TM

    # Small per-sample feature maps: take whole rows, batch samples per block.
    TM = M  # full feature dim (legal even if M % 128 != 0)
    tn_want = max(1, target_elems // max(M, 1))  # >= 8 in this branch
    if tn_want >= N:
        TN = N
    else:
        TN = max(_SUBLANE, (tn_want // _SUBLANE) * _SUBLANE)
    return TN, TM


def drop_path(x, *, p, training, key):
    """Functional DropPath matching DropPath_.forward (returns the new x)."""
    if (not training) or p == 0.0:
        return x  # identity path, exactly like the torch module

    keep_prob = 1.0 - float(p)
    N = x.shape[0]
    M = math.prod(x.shape[1:])
    itemsize = jnp.dtype(x.dtype).itemsize

    # Per-sample keep/drop scale, pre-scaled and cast to x's dtype so the
    # in-kernel multiply stays in-dtype (bf16 VALU on v6e/v7x, no f32 upcast).
    mask = jax.random.bernoulli(key, keep_prob, (N,))
    scale = (mask.astype(jnp.float32) * (1.0 / keep_prob)).astype(x.dtype)
    scale = scale.reshape(N, 1)

    # Contiguous reshape (no HBM pass, no padding). Ragged tails are handled by
    # partial boundary blocks, not by pad/slice passes around the kernel.
    x_flat = x.reshape(N, M)

    TN, TM = _pick_block(N, M, itemsize)
    block_bytes = TN * TM * itemsize
    grid = (pl.cdiv(N, TN), pl.cdiv(M, TM))

    # Double-buffered in + out blocks (+ tiny scale blocks + margin).
    vmem_limit = int(max(32 * 1024 * 1024, 4 * block_bytes + (2 << 20)))

    out = pl.pallas_call(
        _drop_path_kernel,
        out_shape=jax.ShapeDtypeStruct((N, M), x.dtype),
        grid=grid,
        in_specs=[
            pl.BlockSpec((TN, TM), lambda n, m: (n, m)),
            pl.BlockSpec((TN, 1), lambda n, m: (n, 0)),
        ],
        out_specs=pl.BlockSpec((TN, TM), lambda n, m: (n, m)),
        # In-place like the torch op: x's HBM buffer is reused when x is donated
        # at the jit boundary (otherwise XLA inserts one defensive copy).
        input_output_aliases={0: 0},
        compiler_params=pltpu.CompilerParams(
            dimension_semantics=("parallel", "parallel"),
            vmem_limit_bytes=vmem_limit,
        ),
    )(x_flat, scale)
    # TODO(synk): for M < 128 the stores are lane-masked (degenerate tiny maps);
    # a sample-mixing relayout could make them lane-dense but is not worth it here.

    return out.reshape(x.shape)


if __name__ == "__main__":
    key = jax.random.PRNGKey(0)
    kx, km = jax.random.split(key)

    # Small shape consistent with the module's 4-D (N, C, H, W) input.
    N, C, H, W = 2, 4, 16, 16
    p = 0.5
    keep_prob = 1.0 - p

    x = jax.random.normal(kx, (N, C, H, W), jnp.float32)
    out = jax.block_until_ready(drop_path(x, p=p, training=True, key=km))
    assert out.shape == x.shape and out.dtype == x.dtype, (out.shape, out.dtype)

    # Pure-JAX reference with the same per-sample mask.
    mask = jax.random.bernoulli(km, keep_prob, (N,)).astype(jnp.float32)
    ref = x * (mask / keep_prob)[:, None, None, None]
    err = float(jnp.max(jnp.abs(out - ref)))
    assert jnp.allclose(out, ref, rtol=1e-6, atol=1e-6), err

    # Shape whose C*H*W is NOT a multiple of 128: runs without any pad/slice.
    x2 = jax.random.normal(kx, (4, 3, 7, 5), jnp.float32)
    out2 = jax.block_until_ready(drop_path(x2, p=p, training=True, key=km))
    mask2 = jax.random.bernoulli(km, keep_prob, (4,)).astype(jnp.float32)
    ref2 = x2 * (mask2 / keep_prob)[:, None, None, None]
    assert jnp.allclose(out2, ref2, rtol=1e-6, atol=1e-6)

    # Eval mode / p == 0 are the identity, exactly like the torch module.
    assert drop_path(x, p=p, training=False, key=km) is x
    assert drop_path(x, p=0.0, training=True, key=km) is x

    print("KERNEL_OK")
</pallas_src>

<mosaic_0001>
module attributes {stable_mosaic.version = 11 : i64} {
  func.func @_drop_path_kernel(%arg0: i32, %arg1: i32, %arg2: memref<2x1024xf32, #tpu.memory_space<vmem>>, %arg3: memref<2x1xf32, #tpu.memory_space<vmem>>, %arg4: memref<2x1024xf32, #tpu.memory_space<vmem>>) attributes {dimension_semantics = [#tpu.dimension_semantics<parallel>, #tpu.dimension_semantics<parallel>], iteration_bounds = array<i64: 1, 1>, scalar_prefetch = 0 : i64, scratch_operands = 0 : i64, tpu.core_type = #tpu.core_type<tc>, window_params = [{transform_indices = @transform_0, window_bounds = array<i64: 2, 1024>}, {transform_indices = @transform_1, window_bounds = array<i64: 2, 1>}, {transform_indices = @transform_2, window_bounds = array<i64: 2, 1024>}]} {
    %c0 = arith.constant 0 : index
    %c0_0 = arith.constant 0 : index
    %0 = vector.load %arg2[%c0, %c0_0] : memref<2x1024xf32, #tpu.memory_space<vmem>>, vector<2x1024xf32>
    %c0_1 = arith.constant 0 : index
    %c0_2 = arith.constant 0 : index
    %1 = vector.load %arg3[%c0_1, %c0_2] : memref<2x1xf32, #tpu.memory_space<vmem>>, vector<2x1xf32>
    %2 = vector.broadcast %1 : vector<2x1xf32> to vector<2x1024xf32>
    %3 = arith.mulf %0, %2 : vector<2x1024xf32>
    %c0_3 = arith.constant 0 : index
    %c0_4 = arith.constant 0 : index
    %4 = vector.load %arg4[%c0_3, %c0_4] : memref<2x1024xf32, #tpu.memory_space<vmem>>, vector<2x1024xf32>
    tpu.vector_store %arg4[%c0_3, %c0_4], %3 {strides = array<i32>} : memref<2x1024xf32, #tpu.memory_space<vmem>>, vector<2x1024xf32>,
    return
  }
  func.func @transform_0(%arg0: i32, %arg1: i32) -> (i32, i32) {
    %c0_i32 = arith.constant 0 : i32
    return %arg0, %arg1 : i32, i32
  }
  func.func @transform_1(%arg0: i32, %arg1: i32) -> (i32, i32) {
    %c0_i32 = arith.constant 0 : i32
    %c0_i32_0 = arith.constant 0 : i32
    return %arg0, %c0_i32 : i32, i32
  }
  func.func @transform_2(%arg0: i32, %arg1: i32) -> (i32, i32) {
    %c0_i32 = arith.constant 0 : i32
    return %arg0, %arg1 : i32, i32
  }
}

</mosaic_0001>

<llo_original>
// kernel: tpu_custom_call.1
$region0: #{tpu_custom_call.1}
  #allocation0 [shape = 'u32[]', space=smem, size = 0x4, offset = 0x4, fixed_abs, tag = 'smem constant byte address 0x4 - core index']
  #allocation1 [shape = 'u32[144,128]{1,0:T(1,128)}', space=vmem, size = 0x12000, scoped, tag = 'internal scratch']
  %s0 = inlined_call_operand.hbm [shape: f32[2,1024], index: 0, kind: input, shape index: {}, may-alias: {0,2}]
  %s1 = inlined_call_operand.vmem [shape: f32[2,1], index: 1, kind: input, shape index: {}]
  %s2 = inlined_call_operand.hbm [shape: f32[2,1024], index: 2, kind: output, shape index: {}, may-alias: {0,2}]
  %s3 = sld [smem:[#allocation0]]
  $region22: #{tpu_custom_call.1} parent=0
    _
  %s5 = ssub.s32 1, %s3
  %s6 = scalar_select 0, %s5, %s3
  $region1: #{tpu_custom_call.1} parent=0
    #allocation2 [shape = 'u8[8192]{0}', space=vmem, size = 0x2000, scoped, tag = 'input window, operand 0, single buffered']
    #allocation3 [shape = 's32[1]{0}', space=sflag, size = 0x4, scoped, tag = 'scoped memory for tpu_custom_call.1']
    #allocation4 [shape = 's32[1]{0}', space=sflag, size = 0x4, scoped, tag = 'scoped memory for tpu_custom_call.1']
    #allocation5 [shape = 'u8[8192]{0}', space=vmem, size = 0x2000, scoped, tag = 'output window, operand 0, single buffered']
    %7 = vsyncpa [#allocation3], 0
    %8 = vsyncpa [#allocation4], 0
    // Predicated region
    $region2: #{tpu_custom_call.1} parent=1 // pred_check
      _
    $region3: #{tpu_custom_call.1} parent=1 // pred_check_branch
      %10 = sbr.rel (0) target = $region5
    $region4: #{tpu_custom_call.1} parent=1 // pred_region
      %s12 = ssub.s32 256, 256
      %13 = vsyncadd [#allocation3], %s12
      %s15 = sshll.u32 [#allocation2], 4
      %s16 = int_to_ptr.vmem [resolvable:$true] %s15
      %18 = dma.hbm_to_vmem [thread:$0]  %s0, 256, %s16, [#allocation3]
    $region5: #{tpu_custom_call.1} parent=1 // pred_fallthru
      _
    // Predicated region
    $region6: #{tpu_custom_call.1} parent=1 // pred_check
      _
    $region7: #{tpu_custom_call.1} parent=1 // pred_check_branch
      %20 = sbr.rel (0) target = $region9
    $region8: #{tpu_custom_call.1} parent=1 // pred_region
      _
    $region9: #{tpu_custom_call.1} parent=1 // pred_fallthru
      _
    // Predicated region
    $region10: #{tpu_custom_call.1} parent=1 // pred_check
      _
    $region11: #{tpu_custom_call.1} parent=1 // pred_check_branch
      %22 = sbr.rel (0) target = $region13
    $region12: #{tpu_custom_call.1} parent=1 // pred_region
      %23 = dma.done [#allocation3], 256
    $region13: #{tpu_custom_call.1} parent=1 // pred_fallthru
      _
    %v24 = vld [vmem:[#allocation2] sm:$0xff]
    %v25 = vld [vmem:[#allocation2 + $0x8] sm:$0xff]
    %v26 = vld [vmem:[%s1] sm:$0x3]
    %28 = vset.pattern.permute.xlu0 0
    %29 = vperm.xlu0 %28, %v26
    %v30 = vpop.permute.xlu0 %29
    %v32 = vunpack.c.l.s4 269488144
    %v33 = vunpack.c.0.s8 %v32
    %v34 = vlaneseq
    %v35 = vshrl.u32 %v34, 7
    %v36 = vsub.s32 %v33, %v35
    %v37 = vrot.slane %v30, %v36
    %v39 = vmul.f32 %v24, %v37
    %v40 = vmul.f32 %v25, %v37
    %41 = vst [vmem:[#allocation5] sm:$0xff] %v39
    %42 = vst [vmem:[#allocation5 + $0x8] sm:$0xff] %v40
    // Predicated region
    $region14: #{tpu_custom_call.1} parent=1 // pred_check
      _
    $region15: #{tpu_custom_call.1} parent=1 // pred_check_branch
      %44 = sbr.rel (0) target = $region17
    $region16: #{tpu_custom_call.1} parent=1 // pred_region
      %s46 = ssub.s32 256, 256
      %47 = vsyncadd [#allocation4], %s46
      %s49 = sshll.u32 [#allocation5], 4
      %s50 = int_to_ptr.vmem [resolvable:$true] %s49
      %52 = dma.vmem_to_hbm [thread:$0]  %s50, 256, %s2, [#allocation4]
    $region17: #{tpu_custom_call.1} parent=1 // pred_fallthru
      _
    // Predicated region
    $region18: #{tpu_custom_call.1} parent=1 // pred_check
      _
    $region19: #{tpu_custom_call.1} parent=1 // pred_check_branch
      %54 = sbr.rel (0) target = $region21
    $region20: #{tpu_custom_call.1} parent=1 // pred_region
      %55 = dma.done [#allocation4], 256
    $region21: #{tpu_custom_call.1} parent=1 // pred_fallthru
      _
    %56 = vsyncpa [#allocation3], 1
    %57 = vsyncpa [#allocation4], 1

</llo_original>
